<compile_context>
chip_gen: v7x
topology: tpu7x:2x2x1
jax: 0.10.0
libtpu: 0.0.40
codegen_flags: <defaults>
</compile_context>

<pallas_src>
import jax
import jax.numpy as jnp
from jax.experimental import pallas as pl
from jax.experimental.pallas import tpu as pltpu

N_WAY_PAD = 128   # lane-dense padding of the class axis


# ----------------------------------------------------------------------------
# Straight-line fused kernel (single invocation, everything VMEM resident):
#   z_s = relu(xs @ W + b);  z_q = relu(xq @ W + b)
#   proto = normalized_onehot^T @ z_s
#   scores = -cdist(z_q, proto)
# ----------------------------------------------------------------------------
def _proto_net_kernel(xs_ref, xq_ref, w_ref, b_ref, onehot_ref, scores_ref):
    w = w_ref[...]                                    # (K, D) bf16, read once
    b = b_ref[...]                                    # (1, D) f32

    # Embedding pass: bf16 MXU matmuls with f32 results. The in-kernel cast
    # of x avoids a wrapper-side astype HBM round trip (x stays tiny in f32).
    zs = jnp.maximum(
        jnp.dot(xs_ref[...].astype(jnp.bfloat16), w,
                preferred_element_type=jnp.float32) + b, 0.0)    # (Ns, D)
    zq = jnp.maximum(
        jnp.dot(xq_ref[...].astype(jnp.bfloat16), w,
                preferred_element_type=jnp.float32) + b, 0.0)    # (Nq, D)

    # Per-class mean: contract the support axis (axis 0 of both operands)
    # directly — the one-hot is already normalized in the wrapper.
    proto = jax.lax.dot_general(
        onehot_ref[...], zs,
        dimension_numbers=(((0,), (0,)), ((), ())),
        preferred_element_type=jnp.float32)                      # (N_WAY_PAD, D)

    # Pairwise Euclidean distance: ||q||^2 + ||p||^2 - 2 q.p  (epilogue; noise
    # relative to the W-streaming path per review).
    qq = jnp.sum(zq * zq, axis=1, keepdims=True)                 # (Nq, 1)
    pp = jnp.sum(proto * proto, axis=1, keepdims=True)           # (N_WAY_PAD, 1)
    qp = jax.lax.dot_general(
        zq, proto,
        dimension_numbers=(((1,), (1,)), ((), ())),
        preferred_element_type=jnp.float32)                      # (Nq, N_WAY_PAD)
    d2 = jnp.maximum(qq + pp.T - 2.0 * qp, 0.0)
    scores_ref[...] = -jnp.sqrt(d2)


def prototypical_forward(support_images, support_labels, query_images,
                         w, b, *, n_way):
    # TODO(synk): torch computes n_way = len(torch.unique(support_labels)) at
    # runtime (data-dependent shape); here n_way is a static Python argument
    # and labels are assumed to be 0..n_way-1 (same assumption as the torch
    # `for label in range(n_way)` loop).
    Ns = support_images.shape[0]
    Nq = query_images.shape[0]
    K, D = w.shape

    # Flatten NCHW -> (N, K). Reshape of a contiguous array is layout-only;
    # no concatenate / pad / cast copies are made in the wrapper (review:
    # eliminate wrapper-side HBM round trips feeding the kernel).
    xs = support_images.reshape(Ns, K)
    xq = query_images.reshape(Nq, K)
    # W is expected bf16 at rest; cast only if the caller passed f32.
    w_bf16 = w if w.dtype == jnp.bfloat16 else w.astype(jnp.bfloat16)
    b_f32 = b.astype(jnp.float32).reshape(1, D)

    # Lane-dense, pre-normalized one-hot (zero-count guarded) so the kernel's
    # prototype step is a single matmul and the output is 128 lanes wide.
    onehot = jax.nn.one_hot(support_labels, N_WAY_PAD, dtype=jnp.float32)
    counts = jnp.sum(onehot, axis=0, keepdims=True)
    onehot_norm = onehot / jnp.maximum(counts, 1.0)              # (Ns, N_WAY_PAD)

    # Single kernel invocation, whole operands VMEM resident (review: collapse
    # the K grid at this size; per-step overhead dominated the tiled version).
    # TODO(synk): for a base model whose K makes W exceed a few MiB, reinstate
    # a K-tiled reduction grid (TK sized for ~1-4 MiB W tiles, total <= ~48 MiB
    # on v7x) and, at large Ns+Nq, a leading "parallel" M axis for v7x's 2 TCs.
    scores_pad = pl.pallas_call(
        _proto_net_kernel,
        out_shape=jax.ShapeDtypeStruct((Nq, N_WAY_PAD), jnp.float32),
        in_specs=[
            pl.BlockSpec(memory_space=pltpu.MemorySpace.VMEM),   # xs (Ns, K)
            pl.BlockSpec(memory_space=pltpu.MemorySpace.VMEM),   # xq (Nq, K)
            pl.BlockSpec(memory_space=pltpu.MemorySpace.VMEM),   # W  (K, D)
            pl.BlockSpec(memory_space=pltpu.MemorySpace.VMEM),   # b  (1, D)
            pl.BlockSpec(memory_space=pltpu.MemorySpace.VMEM),   # one-hot
        ],
        out_specs=pl.BlockSpec(memory_space=pltpu.MemorySpace.VMEM),
        compiler_params=pltpu.CompilerParams(
            vmem_limit_bytes=32 * 1024 * 1024,    # safe on v5e/v6e/v7x
        ),
    )(xs, xq, w_bf16, b_f32, onehot_norm)

    return scores_pad[:, :n_way]


# ----------------------------------------------------------------------------
# Pure-JAX reference (same bf16 matmul precision) for a correctness check.
# ----------------------------------------------------------------------------
def _reference(support_images, support_labels, query_images, w, b, *, n_way):
    Ns = support_images.shape[0]
    Nq = query_images.shape[0]
    xs = support_images.reshape(Ns, -1).astype(jnp.bfloat16)
    xq = query_images.reshape(Nq, -1).astype(jnp.bfloat16)
    w_bf16 = w.astype(jnp.bfloat16)
    b_f32 = b.astype(jnp.float32)
    zs = jnp.maximum(jnp.dot(xs, w_bf16,
                             preferred_element_type=jnp.float32) + b_f32, 0.0)
    zq = jnp.maximum(jnp.dot(xq, w_bf16,
                             preferred_element_type=jnp.float32) + b_f32, 0.0)
    onehot = jax.nn.one_hot(support_labels, n_way, dtype=jnp.float32)
    proto = (onehot.T @ zs) / jnp.maximum(onehot.sum(0), 1.0)[:, None]
    d2 = jnp.sum((zq[:, None, :] - proto[None, :, :]) ** 2, axis=-1)
    return -jnp.sqrt(jnp.maximum(d2, 0.0))


if __name__ == "__main__":
    key = jax.random.PRNGKey(0)
    k1, k2, k3, k4 = jax.random.split(key, 4)

    # small, module-consistent shapes
    n_way, n_shot, n_query = 4, 2, 8
    C, H, W = 4, 16, 16
    D = 128          # embedding dim = lane width (exactly fills v5e MXU; half
                     # of v6e/v7x's 256 — irrelevant at this memory-bound size)
    Ns = n_way * n_shot
    Kdim = C * H * W

    support_images = jax.random.normal(k1, (Ns, C, H, W), dtype=jnp.float32)
    support_labels = jnp.repeat(jnp.arange(n_way, dtype=jnp.int32), n_shot)
    query_images = jax.random.normal(k2, (n_query, C, H, W), dtype=jnp.float32)

    # deterministic synthetic base-model parameters (flatten -> Linear -> ReLU),
    # weights stored bf16 at rest so the wrapper makes no cast copy.
    w = (jax.random.normal(k3, (Kdim, D), dtype=jnp.float32)
         / jnp.sqrt(jnp.float32(Kdim))).astype(jnp.bfloat16)
    b = 0.01 * jax.random.normal(k4, (1, D), dtype=jnp.float32)

    scores = prototypical_forward(support_images, support_labels,
                                  query_images, w, b, n_way=n_way)
    scores = jax.block_until_ready(scores)

    assert scores.shape == (n_query, n_way)
    assert bool(jnp.all(scores <= 0.0))          # negative distances
    assert bool(jnp.all(jnp.isfinite(scores)))
    ref = _reference(support_images, support_labels, query_images, w, b,
                     n_way=n_way)
    assert bool(jnp.allclose(scores, ref, rtol=2e-2, atol=2e-2))
    print("KERNEL_OK")
</pallas_src>

<mosaic_0001>
module attributes {stable_mosaic.version = 11 : i64} {
  func.func @_proto_net_kernel(%arg0: memref<8x1024xf32, #tpu.memory_space<vmem>>, %arg1: memref<8x1024xf32, #tpu.memory_space<vmem>>, %arg2: memref<1024x128xbf16, #tpu.memory_space<vmem>>, %arg3: memref<1x128xf32, #tpu.memory_space<vmem>>, %arg4: memref<8x128xf32, #tpu.memory_space<vmem>>, %arg5: memref<8x128xf32, #tpu.memory_space<vmem>>) attributes {dimension_semantics = [], scalar_prefetch = 0 : i64, scratch_operands = 0 : i64, tpu.core_type = #tpu.core_type<tc>} {
    %c0 = arith.constant 0 : index
    %c0_0 = arith.constant 0 : index
    %0 = vector.load %arg2[%c0, %c0_0] : memref<1024x128xbf16, #tpu.memory_space<vmem>>, vector<1024x128xbf16>
    %c0_1 = arith.constant 0 : index
    %c0_2 = arith.constant 0 : index
    %1 = vector.load %arg3[%c0_1, %c0_2] : memref<1x128xf32, #tpu.memory_space<vmem>>, vector<1x128xf32>
    %c0_3 = arith.constant 0 : index
    %c0_4 = arith.constant 0 : index
    %2 = vector.load %arg0[%c0_3, %c0_4] : memref<8x1024xf32, #tpu.memory_space<vmem>>, vector<8x1024xf32>
    %3 = arith.truncf %2 : vector<8x1024xf32> to vector<8x1024xbf16>
    %cst = arith.constant dense<0.000000e+00> : vector<8x128xf32>
    %4 = tpu.matmul %3, %0, %cst {dimension_numbers = #tpu.dot_dimension_numbers<[1], [0], [0], [1], [0, 0, 1, 1], [], []>} : vector<8x1024xbf16>, vector<1024x128xbf16>, vector<8x128xf32> -> vector<8x128xf32>
    %5 = vector.broadcast %1 : vector<1x128xf32> to vector<8x128xf32>
    %6 = arith.addf %4, %5 : vector<8x128xf32>
    %cst_5 = arith.constant 0.000000e+00 : f32
    %7 = vector.broadcast %cst_5 : f32 to vector<8x128xf32>
    %8 = arith.maximumf %6, %7 : vector<8x128xf32>
    %c0_6 = arith.constant 0 : index
    %c0_7 = arith.constant 0 : index
    %9 = vector.load %arg1[%c0_6, %c0_7] : memref<8x1024xf32, #tpu.memory_space<vmem>>, vector<8x1024xf32>
    %10 = arith.truncf %9 : vector<8x1024xf32> to vector<8x1024xbf16>
    %cst_8 = arith.constant dense<0.000000e+00> : vector<8x128xf32>
    %11 = tpu.matmul %10, %0, %cst_8 {dimension_numbers = #tpu.dot_dimension_numbers<[1], [0], [0], [1], [0, 0, 1, 1], [], []>} : vector<8x1024xbf16>, vector<1024x128xbf16>, vector<8x128xf32> -> vector<8x128xf32>
    %12 = vector.broadcast %1 : vector<1x128xf32> to vector<8x128xf32>
    %13 = arith.addf %11, %12 : vector<8x128xf32>
    %cst_9 = arith.constant 0.000000e+00 : f32
    %14 = vector.broadcast %cst_9 : f32 to vector<8x128xf32>
    %15 = arith.maximumf %13, %14 : vector<8x128xf32>
    %c0_10 = arith.constant 0 : index
    %c0_11 = arith.constant 0 : index
    %16 = vector.load %arg4[%c0_10, %c0_11] : memref<8x128xf32, #tpu.memory_space<vmem>>, vector<8x128xf32>
    %cst_12 = arith.constant dense<0.000000e+00> : vector<128x128xf32>
    %17 = tpu.matmul %16, %8, %cst_12 {dimension_numbers = #tpu.dot_dimension_numbers<[0], [0], [1], [1], [0, 1, 1, 1], [], []>} : vector<8x128xf32>, vector<8x128xf32>, vector<128x128xf32> -> vector<128x128xf32>
    %18 = arith.mulf %15, %15 : vector<8x128xf32>
    %cst_13 = arith.constant dense<0.000000e+00> : vector<8xf32>
    %19 = vector.multi_reduction <add>, %18, %cst_13 [1] : vector<8x128xf32> to vector<8xf32>
    %20 = vector.shape_cast %19 : vector<8xf32> to vector<8x1xf32>
    %21 = arith.mulf %17, %17 : vector<128x128xf32>
    %cst_14 = arith.constant dense<0.000000e+00> : vector<128xf32>
    %22 = vector.multi_reduction <add>, %21, %cst_14 [1] : vector<128x128xf32> to vector<128xf32>
    %23 = vector.shape_cast %22 : vector<128xf32> to vector<128x1xf32>
    %cst_15 = arith.constant dense<0.000000e+00> : vector<8x128xf32>
    %24 = tpu.matmul %15, %17, %cst_15 {dimension_numbers = #tpu.dot_dimension_numbers<[1], [1], [0], [0], [0, 0, 1, 0], [], []>} : vector<8x128xf32>, vector<128x128xf32>, vector<8x128xf32> -> vector<8x128xf32>
    %25 = tpu.transpose %23, [1, 0] : vector<128x1xf32> -> vector<1x128xf32>
    %26 = vector.broadcast %20 : vector<8x1xf32> to vector<8x128xf32>
    %27 = vector.broadcast %25 : vector<1x128xf32> to vector<8x128xf32>
    %28 = arith.addf %26, %27 : vector<8x128xf32>
    %cst_16 = arith.constant 2.000000e+00 : f32
    %29 = vector.broadcast %cst_16 : f32 to vector<8x128xf32>
    %30 = arith.mulf %29, %24 : vector<8x128xf32>
    %31 = arith.subf %28, %30 : vector<8x128xf32>
    %cst_17 = arith.constant 0.000000e+00 : f32
    %32 = vector.broadcast %cst_17 : f32 to vector<8x128xf32>
    %33 = arith.maximumf %31, %32 : vector<8x128xf32>
    %34 = math.sqrt %33 : vector<8x128xf32>
    %cst_18 = arith.constant 0.000000e+00 : f32
    %35 = vector.broadcast %cst_18 : f32 to vector<8x128xf32>
    %36 = arith.subf %35, %34 : vector<8x128xf32>
    %c0_19 = arith.constant 0 : index
    %c0_20 = arith.constant 0 : index
    %37 = vector.load %arg5[%c0_19, %c0_20] : memref<8x128xf32, #tpu.memory_space<vmem>>, vector<8x128xf32>
    tpu.vector_store %arg5[%c0_19, %c0_20], %36 {strides = array<i32>} : memref<8x128xf32, #tpu.memory_space<vmem>>, vector<8x128xf32>,
    return
  }
}

</mosaic_0001>

<llo_original>
// kernel: tpu_custom_call.1
$region0: #{tpu_custom_call.1}
  #allocation0 [shape = 'u32[]', space=smem, size = 0x4, offset = 0x4, fixed_abs, tag = 'smem constant byte address 0x4 - core index']
  #allocation1 [shape = 'u32[144,128]{1,0:T(1,128)}', space=vmem, size = 0x12000, scoped, tag = 'internal scratch']
  %s0 = inlined_call_operand.hbm [shape: f32[8,1024], index: 0, kind: input, shape index: {}]
  %s1 = inlined_call_operand.hbm [shape: f32[8,1024], index: 1, kind: input, shape index: {}]
  %s2 = inlined_call_operand.hbm [shape: bf16[1024,128], index: 2, kind: input, shape index: {}]
  %s3 = inlined_call_operand.vmem [shape: f32[1,128], index: 3, kind: input, shape index: {}]
  %s4 = inlined_call_operand.vmem [shape: f32[8,128], index: 4, kind: input, shape index: {}]
  %s5 = inlined_call_operand.hbm [shape: f32[8,128], index: 5, kind: output, shape index: {}]
  %s6 = sld [smem:[#allocation0]]
  $region42: #{tpu_custom_call.1} parent=0
    _
  %s8 = ssub.s32 1, %s6
  %s9 = scalar_select 0, %s8, %s6
  $region1: #{tpu_custom_call.1} parent=0
    #allocation2 [shape = 'u8[32768]{0}', space=vmem, size = 0x8000, scoped, tag = 'input window, operand 0, single buffered']
    #allocation3 [shape = 's32[1]{0}', space=sflag, size = 0x4, scoped, tag = 'scoped memory for tpu_custom_call.1']
    #allocation4 [shape = 's32[1]{0}', space=sflag, size = 0x4, scoped, tag = 'scoped memory for tpu_custom_call.1']
    #allocation5 [shape = 'u8[32768]{0}', space=vmem, size = 0x8000, scoped, tag = 'input window, operand 1, single buffered']
    #allocation6 [shape = 's32[1]{0}', space=sflag, size = 0x4, scoped, tag = 'scoped memory for tpu_custom_call.1']
    #allocation7 [shape = 'u8[262144]{0}', space=vmem, size = 0x40000, scoped, tag = 'input window, operand 2, single buffered']
    #allocation8 [shape = 'u8[4096]{0}', space=vmem, size = 0x1000, scoped, tag = 'output window, operand 0, single buffered']
    %10 = vsyncpa [#allocation3], 0
    %11 = vsyncpa [#allocation6], 0
    %12 = vsyncpa [#allocation4], 0
    // Predicated region
    $region2: #{tpu_custom_call.1} parent=1 // pred_check
      _
    $region3: #{tpu_custom_call.1} parent=1 // pred_check_branch
      %14 = sbr.rel (0) target = $region5
    $region4: #{tpu_custom_call.1} parent=1 // pred_region
      %s16 = ssub.s32 1024, 1024
      %17 = vsyncadd [#allocation3], %s16
      %s19 = sshll.u32 [#allocation2], 4
      %s20 = int_to_ptr.vmem [resolvable:$true] %s19
      %22 = dma.hbm_to_vmem [thread:$0]  %s0, 1024, %s20, [#allocation3]
    $region5: #{tpu_custom_call.1} parent=1 // pred_fallthru
      _
    // Predicated region
    $region6: #{tpu_custom_call.1} parent=1 // pred_check
      _
    $region7: #{tpu_custom_call.1} parent=1 // pred_check_branch
      %24 = sbr.rel (0) target = $region9
    $region8: #{tpu_custom_call.1} parent=1 // pred_region
      %s26 = ssub.s32 1024, 1024
      %27 = vsyncadd [#allocation6], %s26
      %s29 = sshll.u32 [#allocation5], 4
      %s30 = int_to_ptr.vmem [resolvable:$true] %s29
      %32 = dma.hbm_to_vmem [thread:$0]  %s1, 1024, %s30, [#allocation6]
    $region9: #{tpu_custom_call.1} parent=1 // pred_fallthru
      _
    // Predicated region
    $region10: #{tpu_custom_call.1} parent=1 // pred_check
      _
    $region11: #{tpu_custom_call.1} parent=1 // pred_check_branch
      %34 = sbr.rel (0) target = $region13
    $region12: #{tpu_custom_call.1} parent=1 // pred_region
      %s36 = ssub.s32 8192, 8192
      %37 = vsyncadd [#allocation6], %s36
      %s38 = sshll.u32 [#allocation7], 4
      %s39 = int_to_ptr.vmem [resolvable:$true] %s38
      %44 = dma.hbm_to_vmem [thread:$0]  %s2, 8192, %s39, [#allocation6], 64, 64, 4
    $region13: #{tpu_custom_call.1} parent=1 // pred_fallthru
      _
    // Predicated region
    $region14: #{tpu_custom_call.1} parent=1 // pred_check
      _
    $region15: #{tpu_custom_call.1} parent=1 // pred_check_branch
      %46 = sbr.rel (0) target = $region17
    $region16: #{tpu_custom_call.1} parent=1 // pred_region
      _
    $region17: #{tpu_custom_call.1} parent=1 // pred_fallthru
      _
    // Predicated region
    $region18: #{tpu_custom_call.1} parent=1 // pred_check
      _
    $region19: #{tpu_custom_call.1} parent=1 // pred_check_branch
      %48 = sbr.rel (0) target = $region21
    $region20: #{tpu_custom_call.1} parent=1 // pred_region
      _
    $region21: #{tpu_custom_call.1} parent=1 // pred_fallthru
      _
    // Predicated region
    $region22: #{tpu_custom_call.1} parent=1 // pred_check
      _
    $region23: #{tpu_custom_call.1} parent=1 // pred_check_branch
      %50 = sbr.rel (0) target = $region25
    $region24: #{tpu_custom_call.1} parent=1 // pred_region
      %51 = dma.done [#allocation3], 1024
    $region25: #{tpu_custom_call.1} parent=1 // pred_fallthru
      _
    // Predicated region
    $region26: #{tpu_custom_call.1} parent=1 // pred_check
      _
    $region27: #{tpu_custom_call.1} parent=1 // pred_check_branch
      %53 = sbr.rel (0) target = $region29
    $region28: #{tpu_custom_call.1} parent=1 // pred_region
      %54 = dma.done [#allocation6], 1024
    $region29: #{tpu_custom_call.1} parent=1 // pred_fallthru
      _
    // Predicated region
    $region30: #{tpu_custom_call.1} parent=1 // pred_check
      _
    $region31: #{tpu_custom_call.1} parent=1 // pred_check_branch
      %56 = sbr.rel (0) target = $region33
    $region32: #{tpu_custom_call.1} parent=1 // pred_region
      %57 = dma.done [#allocation6], 8192
    $region33: #{tpu_custom_call.1} parent=1 // pred_fallthru
      _
    %v59 = vld [vmem:[#allocation7] sm:$0xf]
    %v60 = vld [vmem:[#allocation7 + $0x4] sm:$0xf]
    %v61 = vld [vmem:[#allocation7 + $0x8] sm:$0xf]
    %v62 = vld [vmem:[#allocation7 + $0xc] sm:$0xf]
    %v63 = vld [vmem:[#allocation7 + $0x10] sm:$0xf]
    %v64 = vld [vmem:[#allocation7 + $0x14] sm:$0xf]
    %v65 = vld [vmem:[#allocation7 + $0x18] sm:$0xf]
    %v66 = vld [vmem:[#allocation7 + $0x1c] sm:$0xf]
    %v67 = vld [vmem:[#allocation7 + $0x20] sm:$0xf]
    %v68 = vld [vmem:[#allocation7 + $0x24] sm:$0xf]
    %v69 = vld [vmem:[#allocation7 + $0x28] sm:$0xf]
    %v70 = vld [vmem:[#allocation7 + $0x2c] sm:$0xf]
    %v71 = vld [vmem:[#allocation7 + $0x30] sm:$0xf]
    %v72 = vld [vmem:[#allocation7 + $0x34] sm:$0xf]
    %v73 = vld [vmem:[#allocation7 + $0x38] sm:$0xf]
    %v74 = vld [vmem:[#allocation7 + $0x3c] sm:$0xf]
    %v75 = vld [vmem:[#allocation7 + $0x40] sm:$0xf]
    %v76 = vld [vmem:[#allocation7 + $0x44] sm:$0xf]
    %v77 = vld [vmem:[#allocation7 + $0x48] sm:$0xf]
    %v78 = vld [vmem:[#allocation7 + $0x4c] sm:$0xf]
    %v79 = vld [vmem:[#allocation7 + $0x50] sm:$0xf]
    %v80 = vld [vmem:[#allocation7 + $0x54] sm:$0xf]
    %v81 = vld [vmem:[#allocation7 + $0x58] sm:$0xf]
    %v82 = vld [vmem:[#allocation7 + $0x5c] sm:$0xf]
    %v83 = vld [vmem:[#allocation7 + $0x60] sm:$0xf]
    %v84 = vld [vmem:[#allocation7 + $0x64] sm:$0xf]
    %v85 = vld [vmem:[#allocation7 + $0x68] sm:$0xf]
    %v86 = vld [vmem:[#allocation7 + $0x6c] sm:$0xf]
    %v87 = vld [vmem:[#allocation7 + $0x70] sm:$0xf]
    %v88 = vld [vmem:[#allocation7 + $0x74] sm:$0xf]
    %v89 = vld [vmem:[#allocation7 + $0x78] sm:$0xf]
    %v90 = vld [vmem:[#allocation7 + $0x7c] sm:$0xf]
    %v91 = vld [vmem:[#allocation7 + $0x80] sm:$0xf]
    %v92 = vld [vmem:[#allocation7 + $0x84] sm:$0xf]
    %v93 = vld [vmem:[#allocation7 + $0x88] sm:$0xf]
    %v94 = vld [vmem:[#allocation7 + $0x8c] sm:$0xf]
    %v95 = vld [vmem:[#allocation7 + $0x90] sm:$0xf]
    %v96 = vld [vmem:[#allocation7 + $0x94] sm:$0xf]
    %v97 = vld [vmem:[#allocation7 + $0x98] sm:$0xf]
    %v98 = vld [vmem:[#allocation7 + $0x9c] sm:$0xf]
    %v99 = vld [vmem:[#allocation7 + $0xa0] sm:$0xf]
    %v100 = vld [vmem:[#allocation7 + $0xa4] sm:$0xf]
    %v101 = vld [vmem:[#allocation7 + $0xa8] sm:$0xf]
    %v102 = vld [vmem:[#allocation7 + $0xac] sm:$0xf]
    %v103 = vld [vmem:[#allocation7 + $0xb0] sm:$0xf]
    %v104 = vld [vmem:[#allocation7 + $0xb4] sm:$0xf]
    %v105 = vld [vmem:[#allocation7 + $0xb8] sm:$0xf]
    %v106 = vld [vmem:[#allocation7 + $0xbc] sm:$0xf]
    %v107 = vld [vmem:[#allocation7 + $0xc0] sm:$0xf]
    %v108 = vld [vmem:[#allocation7 + $0xc4] sm:$0xf]
    %v109 = vld [vmem:[#allocation7 + $0xc8] sm:$0xf]
    %v110 = vld [vmem:[#allocation7 + $0xcc] sm:$0xf]
    %v111 = vld [vmem:[#allocation7 + $0xd0] sm:$0xf]
    %v112 = vld [vmem:[#allocation7 + $0xd4] sm:$0xf]
    %v113 = vld [vmem:[#allocation7 + $0xd8] sm:$0xf]
    %v114 = vld [vmem:[#allocation7 + $0xdc] sm:$0xf]
    %v115 = vld [vmem:[#allocation7 + $0xe0] sm:$0xf]
    %v116 = vld [vmem:[#allocation7 + $0xe4] sm:$0xf]
    %v117 = vld [vmem:[#allocation7 + $0xe8] sm:$0xf]
    %v118 = vld [vmem:[#allocation7 + $0xec] sm:$0xf]
    %v119 = vld [vmem:[#allocation7 + $0xf0] sm:$0xf]
    %v120 = vld [vmem:[#allocation7 + $0xf4] sm:$0xf]
    %v121 = vld [vmem:[#allocation7 + $0xf8] sm:$0xf]
    %v122 = vld [vmem:[#allocation7 + $0xfc] sm:$0xf]
    %v123 = vld [vmem:[#allocation7 + $0x100] sm:$0xf]
    %v124 = vld [vmem:[#allocation7 + $0x104] sm:$0xf]
    %v125 = vld [vmem:[#allocation7 + $0x108] sm:$0xf]
    %v126 = vld [vmem:[#allocation7 + $0x10c] sm:$0xf]
    %v127 = vld [vmem:[#allocation7 + $0x110] sm:$0xf]
    %v128 = vld [vmem:[#allocation7 + $0x114] sm:$0xf]
    %v129 = vld [vmem:[#allocation7 + $0x118] sm:$0xf]
    %v130 = vld [vmem:[#allocation7 + $0x11c] sm:$0xf]
    %v131 = vld [vmem:[#allocation7 + $0x120] sm:$0xf]
    %v132 = vld [vmem:[#allocation7 + $0x124] sm:$0xf]
    %v133 = vld [vmem:[#allocation7 + $0x128] sm:$0xf]
    %v134 = vld [vmem:[#allocation7 + $0x12c] sm:$0xf]
    %v135 = vld [vmem:[#allocation7 + $0x130] sm:$0xf]
    %v136 = vld [vmem:[#allocation7 + $0x134] sm:$0xf]
    %v137 = vld [vmem:[#allocation7 + $0x138] sm:$0xf]
    %v138 = vld [vmem:[#allocation7 + $0x13c] sm:$0xf]
    %v139 = vld [vmem:[#allocation7 + $0x140] sm:$0xf]
    %v140 = vld [vmem:[#allocation7 + $0x144] sm:$0xf]
    %v141 = vld [vmem:[#allocation7 + $0x148] sm:$0xf]
    %v142 = vld [vmem:[#allocation7 + $0x14c] sm:$0xf]
    %v143 = vld [vmem:[#allocation7 + $0x150] sm:$0xf]
    %v144 = vld [vmem:[#allocation7 + $0x154] sm:$0xf]
    %v145 = vld [vmem:[#allocation7 + $0x158] sm:$0xf]
    %v146 = vld [vmem:[#allocation7 + $0x15c] sm:$0xf]
    %v147 = vld [vmem:[#allocation7 + $0x160] sm:$0xf]
    %v148 = vld [vmem:[#allocation7 + $0x164] sm:$0xf]
    %v149 = vld [vmem:[#allocation7 + $0x168] sm:$0xf]
    %v150 = vld [vmem:[#allocation7 + $0x16c] sm:$0xf]
    %v151 = vld [vmem:[#allocation7 + $0x170] sm:$0xf]
    %v152 = vld [vmem:[#allocation7 + $0x174] sm:$0xf]
    %v153 = vld [vmem:[#allocation7 + $0x178] sm:$0xf]
    %v154 = vld [vmem:[#allocation7 + $0x17c] sm:$0xf]
    %v155 = vld [vmem:[#allocation7 + $0x180] sm:$0xf]
    %v156 = vld [vmem:[#allocation7 + $0x184] sm:$0xf]
    %v157 = vld [vmem:[#allocation7 + $0x188] sm:$0xf]
    %v158 = vld [vmem:[#allocation7 + $0x18c] sm:$0xf]
    %v159 = vld [vmem:[#allocation7 + $0x190] sm:$0xf]
    %v160 = vld [vmem:[#allocation7 + $0x194] sm:$0xf]
    %v161 = vld [vmem:[#allocation7 + $0x198] sm:$0xf]
    %v162 = vld [vmem:[#allocation7 + $0x19c] sm:$0xf]
    %v163 = vld [vmem:[#allocation7 + $0x1a0] sm:$0xf]
    %v164 = vld [vmem:[#allocation7 + $0x1a4] sm:$0xf]
    %v165 = vld [vmem:[#allocation7 + $0x1a8] sm:$0xf]
    %v166 = vld [vmem:[#allocation7 + $0x1ac] sm:$0xf]
    %v167 = vld [vmem:[#allocation7 + $0x1b0] sm:$0xf]
    %v168 = vld [vmem:[#allocation7 + $0x1b4] sm:$0xf]
    %v169 = vld [vmem:[#allocation7 + $0x1b8] sm:$0xf]
    %v170 = vld [vmem:[#allocation7 + $0x1bc] sm:$0xf]
    %v171 = vld [vmem:[#allocation7 + $0x1c0] sm:$0xf]
    %v172 = vld [vmem:[#allocation7 + $0x1c4] sm:$0xf]
    %v173 = vld [vmem:[#allocation7 + $0x1c8] sm:$0xf]
    %v174 = vld [vmem:[#allocation7 + $0x1cc] sm:$0xf]
    %v175 = vld [vmem:[#allocation7 + $0x1d0] sm:$0xf]
    %v176 = vld [vmem:[#allocation7 + $0x1d4] sm:$0xf]
    %v177 = vld [vmem:[#allocation7 + $0x1d8] sm:$0xf]
    %v178 = vld [vmem:[#allocation7 + $0x1dc] sm:$0xf]
    %v179 = vld [vmem:[#allocation7 + $0x1e0] sm:$0xf]
    %v180 = vld [vmem:[#allocation7 + $0x1e4] sm:$0xf]
    %v181 = vld [vmem:[#allocation7 + $0x1e8] sm:$0xf]
    %v182 = vld [vmem:[#allocation7 + $0x1ec] sm:$0xf]
    %v183 = vld [vmem:[#allocation7 + $0x1f0] sm:$0xf]
    %v184 = vld [vmem:[#allocation7 + $0x1f4] sm:$0xf]
    %v185 = vld [vmem:[#allocation7 + $0x1f8] sm:$0xf]
    %v186 = vld [vmem:[#allocation7 + $0x1fc] sm:$0xf]
    %v187 = vld [vmem:[%s3] sm:$0x1]
    %v188 = vld [vmem:[#allocation2] sm:$0xff]
    %v189 = vld [vmem:[#allocation2 + $0x8] sm:$0xff]
    %v190 = vld [vmem:[#allocation2 + $0x10] sm:$0xff]
    %v191 = vld [vmem:[#allocation2 + $0x18] sm:$0xff]
    %v192 = vld [vmem:[#allocation2 + $0x20] sm:$0xff]
    %v193 = vld [vmem:[#allocation2 + $0x28] sm:$0xff]
    %v194 = vld [vmem:[#allocation2 + $0x30] sm:$0xff]
    %v195 = vld [vmem:[#allocation2 + $0x38] sm:$0xff]
    %v196 = vpack.c.bf16 %v188, %v188
    %v197 = vpack.c.bf16 %v189, %v189
    %v198 = vpack.c.bf16 %v190, %v190
    %v199 = vpack.c.bf16 %v191, %v191
    %v200 = vpack.c.bf16 %v192, %v192
    %v201 = vpack.c.bf16 %v193, %v193
    %v202 = vpack.c.bf16 %v194, %v194
    %v203 = vpack.c.bf16 %v195, %v195
    %v205 = vlaneseq
    %v206 = vshrl.u32 %v205, 7
    %v207 = vsub.s32 0, %v206
    %v208 = vrot.slane %v187, %v207
    %v338 = vunpack.c.l.b16 %v59
    %v339 = vunpack.c.l.b16 %v60
    %v340 = vunpack.c.l.b16 %v61
    %v341 = vunpack.c.l.b16 %v62
    %v342 = vunpack.c.l.b16 %v63
    %v343 = vunpack.c.l.b16 %v64
    %v344 = vunpack.c.l.b16 %v65
    %v345 = vunpack.c.l.b16 %v66
    %v346 = vunpack.c.l.b16 %v67
    %v347 = vunpack.c.l.b16 %v68
    %v348 = vunpack.c.l.b16 %v69
    %v349 = vunpack.c.l.b16 %v70
    %v350 = vunpack.c.l.b16 %v71
    %v351 = vunpack.c.l.b16 %v72
    %v352 = vunpack.c.l.b16 %v73
    %v353 = vunpack.c.l.b16 %v74
    %v354 = vunpack.c.l.b16 %v75
    %v355 = vunpack.c.l.b16 %v76
    %v356 = vunpack.c.l.b16 %v77
    %v357 = vunpack.c.l.b16 %v78
    %v358 = vunpack.c.l.b16 %v79
    %v359 = vunpack.c.l.b16 %v80
    %v360 = vunpack.c.l.b16 %v81
    %v361 = vunpack.c.l.b16 %v82
    %v362 = vunpack.c.l.b16 %v83
    %v363 = vunpack.c.l.b16 %v84
    %v364 = vunpack.c.l.b16 %v85
    %v365 = vunpack.c.l.b16 %v86
    %v366 = vunpack.c.l.b16 %v87
    %v367 = vunpack.c.l.b16 %v88
    %v368 = vunpack.c.l.b16 %v89
    %v369 = vunpack.c.l.b16 %v90
    %v370 = vunpack.c.l.b16 %v91
    %v371 = vunpack.c.l.b16 %v92
    %v372 = vunpack.c.l.b16 %v93
    %v373 = vunpack.c.l.b16 %v94
    %v374 = vunpack.c.l.b16 %v95
    %v375 = vunpack.c.l.b16 %v96
    %v376 = vunpack.c.l.b16 %v97
    %v377 = vunpack.c.l.b16 %v98
    %v378 = vunpack.c.l.b16 %v99
    %v379 = vunpack.c.l.b16 %v100
    %v380 = vunpack.c.l.b16 %v101
    %v381 = vunpack.c.l.b16 %v102
    %v382 = vunpack.c.l.b16 %v103
    %v383 = vunpack.c.l.b16 %v104
    %v384 = vunpack.c.l.b16 %v105
    %v385 = vunpack.c.l.b16 %v106
    %v386 = vunpack.c.l.b16 %v107
    %v387 = vunpack.c.l.b16 %v108
    %v388 = vunpack.c.l.b16 %v109
    %v389 = vunpack.c.l.b16 %v110
    %v390 = vunpack.c.l.b16 %v111
    %v391 = vunpack.c.l.b16 %v112
    %v392 = vunpack.c.l.b16 %v113
    %v393 = vunpack.c.l.b16 %v114
    %v394 = vunpack.c.l.b16 %v115
    %v395 = vunpack.c.l.b16 %v116
    %v396 = vunpack.c.l.b16 %v117
    %v397 = vunpack.c.l.b16 %v118
    %v398 = vunpack.c.l.b16 %v119
    %v399 = vunpack.c.l.b16 %v120
    %v400 = vunpack.c.l.b16 %v121
    %v401 = vunpack.c.l.b16 %v122
    %v402 = vunpack.c.l.b16 %v123
    %v403 = vunpack.c.l.b16 %v124
    %v404 = vunpack.c.l.b16 %v125
    %v405 = vunpack.c.l.b16 %v126
    %v406 = vunpack.c.l.b16 %v127
    %v407 = vunpack.c.l.b16 %v128
    %v408 = vunpack.c.l.b16 %v129
    %v409 = vunpack.c.l.b16 %v130
    %v410 = vunpack.c.l.b16 %v131
    %v411 = vunpack.c.l.b16 %v132
    %v412 = vunpack.c.l.b16 %v133
    %v413 = vunpack.c.l.b16 %v134
    %v414 = vunpack.c.l.b16 %v135
    %v415 = vunpack.c.l.b16 %v136
    %v416 = vunpack.c.l.b16 %v137
    %v417 = vunpack.c.l.b16 %v138
    %v418 = vunpack.c.l.b16 %v139
    %v419 = vunpack.c.l.b16 %v140
    %v420 = vunpack.c.l.b16 %v141
    %v421 = vunpack.c.l.b16 %v142
    %v422 = vunpack.c.l.b16 %v143
    %v423 = vunpack.c.l.b16 %v144
    %v424 = vunpack.c.l.b16 %v145
    %v425 = vunpack.c.l.b16 %v146
    %v426 = vunpack.c.l.b16 %v147
    %v427 = vunpack.c.l.b16 %v148
    %v428 = vunpack.c.l.b16 %v149
    %v429 = vunpack.c.l.b16 %v150
    %v430 = vunpack.c.l.b16 %v151
    %v431 = vunpack.c.l.b16 %v152
    %v432 = vunpack.c.l.b16 %v153
    %v433 = vunpack.c.l.b16 %v154
    %v434 = vunpack.c.l.b16 %v155
    %v435 = vunpack.c.l.b16 %v156
    %v436 = vunpack.c.l.b16 %v157
    %v437 = vunpack.c.l.b16 %v158
    %v438 = vunpack.c.l.b16 %v159
    %v439 = vunpack.c.l.b16 %v160
    %v440 = vunpack.c.l.b16 %v161
    %v441 = vunpack.c.l.b16 %v162
    %v442 = vunpack.c.l.b16 %v163
    %v443 = vunpack.c.l.b16 %v164
    %v444 = vunpack.c.l.b16 %v165
    %v445 = vunpack.c.l.b16 %v166
    %v446 = vunpack.c.l.b16 %v167
    %v447 = vunpack.c.l.b16 %v168
    %v448 = vunpack.c.l.b16 %v169
    %v449 = vunpack.c.l.b16 %v170
    %v450 = vunpack.c.l.b16 %v171
    %v451 = vunpack.c.l.b16 %v172
    %v452 = vunpack.c.l.b16 %v173
    %v453 = vunpack.c.l.b16 %v174
    %v454 = vunpack.c.l.b16 %v175
    %v455 = vunpack.c.l.b16 %v176
    %v456 = vunpack.c.l.b16 %v177
    %v457 = vunpack.c.l.b16 %v178
    %v458 = vunpack.c.l.b16 %v179
    %v459 = vunpack.c.l.b16 %v180
    %v460 = vunpack.c.l.b16 %v181
    %v461 = vunpack.c.l.b16 %v182
    %v462 = vunpack.c.l.b16 %v183
    %v463 = vunpack.c.l.b16 %v184
    %v464 = vunpack.c.l.b16 %v185
    %v465 = vunpack.c.l.b16 %v186
    %v466 = vpack.c.b16 %v339, %v338
    %v467 = vpack.c.b16 %v341, %v340
    %v468 = vpack.c.b16 %v343, %v342
    %v469 = vpack.c.b16 %v345, %v344
    %v470 = vpack.c.b16 %v347, %v346
    %v471 = vpack.c.b16 %v349, %v348
    %v472 = vpack.c.b16 %v351, %v350
    %v473 = vpack.c.b16 %v353, %v352
    %v474 = vpack.c.b16 %v355, %v354
    %v475 = vpack.c.b16 %v357, %v356
    %v476 = vpack.c.b16 %v359, %v358
    %v477 = vpack.c.b16 %v361, %v360
    %v478 = vpack.c.b16 %v363, %v362
    %v479 = vpack.c.b16 %v365, %v364
    %v480 = vpack.c.b16 %v367, %v366
    %v481 = vpack.c.b16 %v369, %v368
    %v482 = vpack.c.b16 %v371, %v370
    %v483 = vpack.c.b16 %v373, %v372
    %v484 = vpack.c.b16 %v375, %v374
    %v485 = vpack.c.b16 %v377, %v376
    %v486 = vpack.c.b16 %v379, %v378
    %v487 = vpack.c.b16 %v381, %v380
    %v488 = vpack.c.b16 %v383, %v382
    %v489 = vpack.c.b16 %v385, %v384
    %v490 = vpack.c.b16 %v387, %v386
    %v491 = vpack.c.b16 %v389, %v388
    %v492 = vpack.c.b16 %v391, %v390
    %v493 = vpack.c.b16 %v393, %v392
    %v494 = vpack.c.b16 %v395, %v394
    %v495 = vpack.c.b16 %v397, %v396
    %v496 = vpack.c.b16 %v399, %v398
    %v497 = vpack.c.b16 %v401, %v400
    %v498 = vpack.c.b16 %v403, %v402
    %v499 = vpack.c.b16 %v405, %v404
    %v500 = vpack.c.b16 %v407, %v406
    %v501 = vpack.c.b16 %v409, %v408
    %v502 = vpack.c.b16 %v411, %v410
    %v503 = vpack.c.b16 %v413, %v412
    %v504 = vpack.c.b16 %v415, %v414
    %v505 = vpack.c.b16 %v417, %v416
    %v506 = vpack.c.b16 %v419, %v418
    %v507 = vpack.c.b16 %v421, %v420
    %v508 = vpack.c.b16 %v423, %v422
    %v509 = vpack.c.b16 %v425, %v424
    %v510 = vpack.c.b16 %v427, %v426
    %v511 = vpack.c.b16 %v429, %v428
    %v512 = vpack.c.b16 %v431, %v430
    %v513 = vpack.c.b16 %v433, %v432
    %v514 = vpack.c.b16 %v435, %v434
    %v515 = vpack.c.b16 %v437, %v436
    %v516 = vpack.c.b16 %v439, %v438
    %v517 = vpack.c.b16 %v441, %v440
    %v518 = vpack.c.b16 %v443, %v442
    %v519 = vpack.c.b16 %v445, %v444
    %v520 = vpack.c.b16 %v447, %v446
    %v521 = vpack.c.b16 %v449, %v448
    %v522 = vpack.c.b16 %v451, %v450
    %v523 = vpack.c.b16 %v453, %v452
    %v524 = vpack.c.b16 %v455, %v454
    %v525 = vpack.c.b16 %v457, %v456
    %v526 = vpack.c.b16 %v459, %v458
    %v527 = vpack.c.b16 %v461, %v460
    %v528 = vpack.c.b16 %v463, %v462
    %v529 = vpack.c.b16 %v465, %v464
    %594 = vmatprep.subr.bf16.mxu0 0
    %595 = vmatpush1.bf16.msra.mxu0 %v466
    %596 = vmatprep.subr.bf16.mxu0 0
    %597 = vmatpush1.bf16.msra.mxu0 %v467
    %598 = vmatprep.subr.bf16.mxu0 0
    %599 = vmatpush1.bf16.msra.mxu0 %v468
    %600 = vmatprep.subr.bf16.mxu0 0
    %601 = vmatpush1.bf16.msra.mxu0 %v469
    %602 = vmatprep.subr.bf16.mxu0 0
    %603 = vmatpush1.bf16.msra.mxu0 %v470
    %604 = vmatprep.subr.bf16.mxu0 0
    %605 = vmatpush1.bf16.msra.mxu0 %v471
    %606 = vmatprep.subr.bf16.mxu0 0
    %607 = vmatpush1.bf16.msra.mxu0 %v472
    %608 = vmatprep.subr.bf16.mxu0 0
    %609 = vmatpush1.bf16.msra.mxu0 %v473
    %610 = vmatprep.subr.bf16.mxu0 0
    %611 = vmatpush1.bf16.msra.mxu0 %v474
    %612 = vmatprep.subr.bf16.mxu0 0
    %613 = vmatpush1.bf16.msra.mxu0 %v475
    %614 = vmatprep.subr.bf16.mxu0 0
    %615 = vmatpush1.bf16.msra.mxu0 %v476
    %616 = vmatprep.subr.bf16.mxu0 0
    %617 = vmatpush1.bf16.msra.mxu0 %v477
    %618 = vmatprep.subr.bf16.mxu0 0
    %619 = vmatpush1.bf16.msra.mxu0 %v478
    %620 = vmatprep.subr.bf16.mxu0 0
    %621 = vmatpush1.bf16.msra.mxu0 %v479
    %622 = vmatprep.subr.bf16.mxu0 0
    %623 = vmatpush1.bf16.msra.mxu0 %v480
    %624 = vmatprep.subr.bf16.mxu0 0
    %625 = vmatpush1.bf16.msra.mxu0 %v481
    %626 = vmatprep.mubr.bf16.mxu0 %v197
    %627 = vmatmul.mubr.bf16.gmra.mrb[0].mxu0 %v196
    %v628 = vpop.f32.mrb[0].mxu0
    %v629 = vadd.f32 %v208, %v628
    %v630 = vpop.f32.mrb[0].mxu0
    %v631 = vpop.f32.mrb[0].mxu0
    %v632 = vpop.f32.mrb[0].mxu0
    %633 = vdwg.mxu0
    %634 = vmatprep.subr.bf16.mxu0 0
    %635 = vmatpush1.bf16.msra.mxu0 %v482
    %636 = vmatprep.subr.bf16.mxu0 0
    %637 = vmatpush1.bf16.msra.mxu0 %v483
    %638 = vmatprep.subr.bf16.mxu0 0
    %639 = vmatpush1.bf16.msra.mxu0 %v484
    %640 = vmatprep.subr.bf16.mxu0 0
    %641 = vmatpush1.bf16.msra.mxu0 %v485
    %642 = vmatprep.subr.bf16.mxu0 0
    %643 = vmatpush1.bf16.msra.mxu0 %v486
    %644 = vmatprep.subr.bf16.mxu0 0
    %645 = vmatpush1.bf16.msra.mxu0 %v487
    %646 = vmatprep.subr.bf16.mxu0 0
    %647 = vmatpush1.bf16.msra.mxu0 %v488
    %648 = vmatprep.subr.bf16.mxu0 0
    %649 = vmatpush1.bf16.msra.mxu0 %v489
    %650 = vmatprep.subr.bf16.mxu0 0
    %651 = vmatpush1.bf16.msra.mxu0 %v490
    %652 = vmatprep.subr.bf16.mxu0 0
    %653 = vmatpush1.bf16.msra.mxu0 %v491
    %654 = vmatprep.subr.bf16.mxu0 0
    %655 = vmatpush1.bf16.msra.mxu0 %v492
    %656 = vmatprep.subr.bf16.mxu0 0
    %657 = vmatpush1.bf16.msra.mxu0 %v493
    %658 = vmatprep.subr.bf16.mxu0 0
    %659 = vmatpush1.bf16.msra.mxu0 %v494
    %660 = vmatprep.subr.bf16.mxu0 0
    %661 = vmatpush1.bf16.msra.mxu0 %v495
    %662 = vmatprep.subr.bf16.mxu0 0
    %663 = vmatpush1.bf16.msra.mxu0 %v496
    %664 = vmatprep.subr.bf16.mxu0 0
    %665 = vmatpush1.bf16.msra.mxu0 %v497
    %666 = vmatprep.mubr.bf16.mxu0 %v199
    %667 = vmatmul.mubr.bf16.gmra.mrb[0].mxu0 %v198
    %v668 = vpop.f32.mrb[0].mxu0
    %v669 = vadd.f32 %v629, %v668
    %v670 = vpop.f32.mrb[0].mxu0
    %v671 = vpop.f32.mrb[0].mxu0
    %v672 = vpop.f32.mrb[0].mxu0
    %673 = vdwg.mxu0
    %674 = vmatprep.subr.bf16.mxu0 0
    %675 = vmatpush1.bf16.msra.mxu0 %v498
    %676 = vmatprep.subr.bf16.mxu0 0
    %677 = vmatpush1.bf16.msra.mxu0 %v499
    %678 = vmatprep.subr.bf16.mxu0 0
    %679 = vmatpush1.bf16.msra.mxu0 %v500
    %680 = vmatprep.subr.bf16.mxu0 0
    %681 = vmatpush1.bf16.msra.mxu0 %v501
    %682 = vmatprep.subr.bf16.mxu0 0
    %683 = vmatpush1.bf16.msra.mxu0 %v502
    %684 = vmatprep.subr.bf16.mxu0 0
    %685 = vmatpush1.bf16.msra.mxu0 %v503
    %686 = vmatprep.subr.bf16.mxu0 0
    %687 = vmatpush1.bf16.msra.mxu0 %v504
    %688 = vmatprep.subr.bf16.mxu0 0
    %689 = vmatpush1.bf16.msra.mxu0 %v505
    %690 = vmatprep.subr.bf16.mxu0 0
    %691 = vmatpush1.bf16.msra.mxu0 %v506
    %692 = vmatprep.subr.bf16.mxu0 0
    %693 = vmatpush1.bf16.msra.mxu0 %v507
    %694 = vmatprep.subr.bf16.mxu0 0
    %695 = vmatpush1.bf16.msra.mxu0 %v508
    %696 = vmatprep.subr.bf16.mxu0 0
    %697 = vmatpush1.bf16.msra.mxu0 %v509
    %698 = vmatprep.subr.bf16.mxu0 0
    %699 = vmatpush1.bf16.msra.mxu0 %v510
    %700 = vmatprep.subr.bf16.mxu0 0
    %701 = vmatpush1.bf16.msra.mxu0 %v511
    %702 = vmatprep.subr.bf16.mxu0 0
    %703 = vmatpush1.bf16.msra.mxu0 %v512
    %704 = vmatprep.subr.bf16.mxu0 0
    %705 = vmatpush1.bf16.msra.mxu0 %v513
    %706 = vmatprep.mubr.bf16.mxu0 %v201
    %707 = vmatmul.mubr.bf16.gmra.mrb[0].mxu0 %v200
    %v708 = vpop.f32.mrb[0].mxu0
    %v709 = vadd.f32 %v669, %v708
    %v710 = vpop.f32.mrb[0].mxu0
    %v711 = vpop.f32.mrb[0].mxu0
    %v712 = vpop.f32.mrb[0].mxu0
    %713 = vdwg.mxu0
    %714 = vmatprep.subr.bf16.mxu0 0
    %715 = vmatpush1.bf16.msra.mxu0 %v514
    %716 = vmatprep.subr.bf16.mxu0 0
    %717 = vmatpush1.bf16.msra.mxu0 %v515
    %718 = vmatprep.subr.bf16.mxu0 0
    %719 = vmatpush1.bf16.msra.mxu0 %v516
    %720 = vmatprep.subr.bf16.mxu0 0
    %721 = vmatpush1.bf16.msra.mxu0 %v517
    %722 = vmatprep.subr.bf16.mxu0 0
    %723 = vmatpush1.bf16.msra.mxu0 %v518
    %724 = vmatprep.subr.bf16.mxu0 0
    %725 = vmatpush1.bf16.msra.mxu0 %v519
    %726 = vmatprep.subr.bf16.mxu0 0
    %727 = vmatpush1.bf16.msra.mxu0 %v520
    %728 = vmatprep.subr.bf16.mxu0 0
    %729 = vmatpush1.bf16.msra.mxu0 %v521
    %730 = vmatprep.subr.bf16.mxu0 0
    %731 = vmatpush1.bf16.msra.mxu0 %v522
    %732 = vmatprep.subr.bf16.mxu0 0
    %733 = vmatpush1.bf16.msra.mxu0 %v523
    %734 = vmatprep.subr.bf16.mxu0 0
    %735 = vmatpush1.bf16.msra.mxu0 %v524
    %736 = vmatprep.subr.bf16.mxu0 0
    %737 = vmatpush1.bf16.msra.mxu0 %v525
    %738 = vmatprep.subr.bf16.mxu0 0
    %739 = vmatpush1.bf16.msra.mxu0 %v526
    %740 = vmatprep.subr.bf16.mxu0 0
    %741 = vmatpush1.bf16.msra.mxu0 %v527
    %742 = vmatprep.subr.bf16.mxu0 0
    %743 = vmatpush1.bf16.msra.mxu0 %v528
    %744 = vmatprep.subr.bf16.mxu0 0
    %745 = vmatpush1.bf16.msra.mxu0 %v529
    %746 = vmatprep.mubr.bf16.mxu0 %v203
    %747 = vmatmul.mubr.bf16.gmra.mrb[0].mxu0 %v202
    %v748 = vpop.f32.mrb[0].mxu0
    %v749 = vadd.f32 %v709, %v748
    %v750 = vpop.f32.mrb[0].mxu0
    %v751 = vpop.f32.mrb[0].mxu0
    %v752 = vpop.f32.mrb[0].mxu0
    %753 = vdwg.mxu0
    %v754 = vmax.f32 %v749, 0.0
    %v755 = vld [vmem:[#allocation5] sm:$0xff]
    %v756 = vld [vmem:[#allocation5 + $0x8] sm:$0xff]
    %v757 = vld [vmem:[#allocation5 + $0x10] sm:$0xff]
    %v758 = vld [vmem:[#allocation5 + $0x18] sm:$0xff]
    %v759 = vld [vmem:[#allocation5 + $0x20] sm:$0xff]
    %v760 = vld [vmem:[#allocation5 + $0x28] sm:$0xff]
    %v761 = vld [vmem:[#allocation5 + $0x30] sm:$0xff]
    %v762 = vld [vmem:[#allocation5 + $0x38] sm:$0xff]
    %v763 = vpack.c.bf16 %v755, %v755
    %v764 = vpack.c.bf16 %v756, %v756
    %v765 = vpack.c.bf16 %v757, %v757
    %v766 = vpack.c.bf16 %v758, %v758
    %v767 = vpack.c.bf16 %v759, %v759
    %v768 = vpack.c.bf16 %v760, %v760
    %v769 = vpack.c.bf16 %v761, %v761
    %v770 = vpack.c.bf16 %v762, %v762
    %771 = vmatprep.subr.bf16.mxu0 0
    %772 = vmatpush1.bf16.msra.mxu0 %v466
    %773 = vmatprep.subr.bf16.mxu0 0
    %774 = vmatpush1.bf16.msra.mxu0 %v467
    %775 = vmatprep.subr.bf16.mxu0 0
    %776 = vmatpush1.bf16.msra.mxu0 %v468
    %777 = vmatprep.subr.bf16.mxu0 0
    %778 = vmatpush1.bf16.msra.mxu0 %v469
    %779 = vmatprep.subr.bf16.mxu0 0
    %780 = vmatpush1.bf16.msra.mxu0 %v470
    %781 = vmatprep.subr.bf16.mxu0 0
    %782 = vmatpush1.bf16.msra.mxu0 %v471
    %783 = vmatprep.subr.bf16.mxu0 0
    %784 = vmatpush1.bf16.msra.mxu0 %v472
    %785 = vmatprep.subr.bf16.mxu0 0
    %786 = vmatpush1.bf16.msra.mxu0 %v473
    %787 = vmatprep.subr.bf16.mxu0 0
    %788 = vmatpush1.bf16.msra.mxu0 %v474
    %789 = vmatprep.subr.bf16.mxu0 0
    %790 = vmatpush1.bf16.msra.mxu0 %v475
    %791 = vmatprep.subr.bf16.mxu0 0
    %792 = vmatpush1.bf16.msra.mxu0 %v476
    %793 = vmatprep.subr.bf16.mxu0 0
    %794 = vmatpush1.bf16.msra.mxu0 %v477
    %795 = vmatprep.subr.bf16.mxu0 0
    %796 = vmatpush1.bf16.msra.mxu0 %v478
    %797 = vmatprep.subr.bf16.mxu0 0
    %798 = vmatpush1.bf16.msra.mxu0 %v479
    %799 = vmatprep.subr.bf16.mxu0 0
    %800 = vmatpush1.bf16.msra.mxu0 %v480
    %801 = vmatprep.subr.bf16.mxu0 0
    %802 = vmatpush1.bf16.msra.mxu0 %v481
    %803 = vmatprep.mubr.bf16.mxu0 %v764
    %804 = vmatmul.mubr.bf16.gmra.mrb[0].mxu0 %v763
    %v805 = vpop.f32.mrb[0].mxu0
    %v806 = vadd.f32 %v208, %v805
    %v807 = vpop.f32.mrb[0].mxu0
    %v808 = vpop.f32.mrb[0].mxu0
    %v809 = vpop.f32.mrb[0].mxu0
    %810 = vdwg.mxu0
    %811 = vmatprep.subr.bf16.mxu0 0
    %812 = vmatpush1.bf16.msra.mxu0 %v482
    %813 = vmatprep.subr.bf16.mxu0 0
    %814 = vmatpush1.bf16.msra.mxu0 %v483
    %815 = vmatprep.subr.bf16.mxu0 0
    %816 = vmatpush1.bf16.msra.mxu0 %v484
    %817 = vmatprep.subr.bf16.mxu0 0
    %818 = vmatpush1.bf16.msra.mxu0 %v485
    %819 = vmatprep.subr.bf16.mxu0 0
    %820 = vmatpush1.bf16.msra.mxu0 %v486
    %821 = vmatprep.subr.bf16.mxu0 0
    %822 = vmatpush1.bf16.msra.mxu0 %v487
    %823 = vmatprep.subr.bf16.mxu0 0
    %824 = vmatpush1.bf16.msra.mxu0 %v488
    %825 = vmatprep.subr.bf16.mxu0 0
    %826 = vmatpush1.bf16.msra.mxu0 %v489
    %827 = vmatprep.subr.bf16.mxu0 0
    %828 = vmatpush1.bf16.msra.mxu0 %v490
    %829 = vmatprep.subr.bf16.mxu0 0
    %830 = vmatpush1.bf16.msra.mxu0 %v491
    %831 = vmatprep.subr.bf16.mxu0 0
    %832 = vmatpush1.bf16.msra.mxu0 %v492
    %833 = vmatprep.subr.bf16.mxu0 0
    %834 = vmatpush1.bf16.msra.mxu0 %v493
    %835 = vmatprep.subr.bf16.mxu0 0
    %836 = vmatpush1.bf16.msra.mxu0 %v494
    %837 = vmatprep.subr.bf16.mxu0 0
    %838 = vmatpush1.bf16.msra.mxu0 %v495
    %839 = vmatprep.subr.bf16.mxu0 0
    %840 = vmatpush1.bf16.msra.mxu0 %v496
    %841 = vmatprep.subr.bf16.mxu0 0
    %842 = vmatpush1.bf16.msra.mxu0 %v497
    %843 = vmatprep.mubr.bf16.mxu0 %v766
    %844 = vmatmul.mubr.bf16.gmra.mrb[0].mxu0 %v765
    %v845 = vpop.f32.mrb[0].mxu0
    %v846 = vadd.f32 %v806, %v845
    %v847 = vpop.f32.mrb[0].mxu0
    %v848 = vpop.f32.mrb[0].mxu0
    %v849 = vpop.f32.mrb[0].mxu0
    %850 = vdwg.mxu0
    %851 = vmatprep.subr.bf16.mxu0 0
    %852 = vmatpush1.bf16.msra.mxu0 %v498
    %853 = vmatprep.subr.bf16.mxu0 0
    %854 = vmatpush1.bf16.msra.mxu0 %v499
    %855 = vmatprep.subr.bf16.mxu0 0
    %856 = vmatpush1.bf16.msra.mxu0 %v500
    %857 = vmatprep.subr.bf16.mxu0 0
    %858 = vmatpush1.bf16.msra.mxu0 %v501
    %859 = vmatprep.subr.bf16.mxu0 0
    %860 = vmatpush1.bf16.msra.mxu0 %v502
    %861 = vmatprep.subr.bf16.mxu0 0
    %862 = vmatpush1.bf16.msra.mxu0 %v503
    %863 = vmatprep.subr.bf16.mxu0 0
    %864 = vmatpush1.bf16.msra.mxu0 %v504
    %865 = vmatprep.subr.bf16.mxu0 0
    %866 = vmatpush1.bf16.msra.mxu0 %v505
    %867 = vmatprep.subr.bf16.mxu0 0
    %868 = vmatpush1.bf16.msra.mxu0 %v506
    %869 = vmatprep.subr.bf16.mxu0 0
    %870 = vmatpush1.bf16.msra.mxu0 %v507
    %871 = vmatprep.subr.bf16.mxu0 0
    %872 = vmatpush1.bf16.msra.mxu0 %v508
    %873 = vmatprep.subr.bf16.mxu0 0
    %874 = vmatpush1.bf16.msra.mxu0 %v509
    %875 = vmatprep.subr.bf16.mxu0 0
    %876 = vmatpush1.bf16.msra.mxu0 %v510
    %877 = vmatprep.subr.bf16.mxu0 0
    %878 = vmatpush1.bf16.msra.mxu0 %v511
    %879 = vmatprep.subr.bf16.mxu0 0
    %880 = vmatpush1.bf16.msra.mxu0 %v512
    %881 = vmatprep.subr.bf16.mxu0 0
    %882 = vmatpush1.bf16.msra.mxu0 %v513
    %883 = vmatprep.mubr.bf16.mxu0 %v768
    %884 = vmatmul.mubr.bf16.gmra.mrb[0].mxu0 %v767
    %v885 = vpop.f32.mrb[0].mxu0
    %v886 = vadd.f32 %v846, %v885
    %v887 = vpop.f32.mrb[0].mxu0
    %v888 = vpop.f32.mrb[0].mxu0
    %v889 = vpop.f32.mrb[0].mxu0
    %890 = vdwg.mxu0
    %891 = vmatprep.subr.bf16.mxu0 0
    %892 = vmatpush1.bf16.msra.mxu0 %v514
    %893 = vmatprep.subr.bf16.mxu0 0
    %894 = vmatpush1.bf16.msra.mxu0 %v515
    %895 = vmatprep.subr.bf16.mxu0 0
    %896 = vmatpush1.bf16.msra.mxu0 %v516
    %897 = vmatprep.subr.bf16.mxu0 0
    %898 = vmatpush1.bf16.msra.mxu0 %v517
    %899 = vmatprep.subr.bf16.mxu0 0
    %900 = vmatpush1.bf16.msra.mxu0 %v518
    %901 = vmatprep.subr.bf16.mxu0 0
    %902 = vmatpush1.bf16.msra.mxu0 %v519
    %903 = vmatprep.subr.bf16.mxu0 0
    %904 = vmatpush1.bf16.msra.mxu0 %v520
    %905 = vmatprep.subr.bf16.mxu0 0
    %906 = vmatpush1.bf16.msra.mxu0 %v521
    %907 = vmatprep.subr.bf16.mxu0 0
    %908 = vmatpush1.bf16.msra.mxu0 %v522
    %909 = vmatprep.subr.bf16.mxu0 0
    %910 = vmatpush1.bf16.msra.mxu0 %v523
    %911 = vmatprep.subr.bf16.mxu0 0
    %912 = vmatpush1.bf16.msra.mxu0 %v524
    %913 = vmatprep.subr.bf16.mxu0 0
    %914 = vmatpush1.bf16.msra.mxu0 %v525
    %915 = vmatprep.subr.bf16.mxu0 0
    %916 = vmatpush1.bf16.msra.mxu0 %v526
    %917 = vmatprep.subr.bf16.mxu0 0
    %918 = vmatpush1.bf16.msra.mxu0 %v527
    %919 = vmatprep.subr.bf16.mxu0 0
    %920 = vmatpush1.bf16.msra.mxu0 %v528
    %921 = vmatprep.subr.bf16.mxu0 0
    %922 = vmatpush1.bf16.msra.mxu0 %v529
    %923 = vmatprep.mubr.bf16.mxu0 %v770
    %924 = vmatmul.mubr.bf16.gmra.mrb[0].mxu0 %v769
    %v925 = vpop.f32.mrb[0].mxu0
    %v926 = vadd.f32 %v886, %v925
    %v927 = vpop.f32.mrb[0].mxu0
    %v928 = vpop.f32.mrb[0].mxu0
    %v929 = vpop.f32.mrb[0].mxu0
    %930 = vdwg.mxu0
    %v931 = vmax.f32 %v926, 0.0
    %v932 = vld [vmem:[%s4] sm:$0xff]
    %933 = vxpose.xlu0.b32.start [1/16] %v932, 128
    %934 = vxpose.xlu0.b32.cont [2/16] 0.0, 128
    %935 = vxpose.xlu0.b32.cont [3/16] 0.0, 128
    %936 = vxpose.xlu0.b32.cont [4/16] 0.0, 128
    %937 = vxpose.xlu0.b32.cont [5/16] 0.0, 128
    %938 = vxpose.xlu0.b32.cont [6/16] 0.0, 128
    %939 = vxpose.xlu0.b32.cont [7/16] 0.0, 128
    %940 = vxpose.xlu0.b32.cont [8/16] 0.0, 128
    %941 = vxpose.xlu0.b32.cont [9/16] 0.0, 128
    %942 = vxpose.xlu0.b32.cont [10/16] 0.0, 128
    %943 = vxpose.xlu0.b32.cont [11/16] 0.0, 128
    %944 = vxpose.xlu0.b32.cont [12/16] 0.0, 128
    %945 = vxpose.xlu0.b32.cont [13/16] 0.0, 128
    %946 = vxpose.xlu0.b32.cont [14/16] 0.0, 128
    %947 = vxpose.xlu0.b32.cont [15/16] 0.0, 128
    %948 = vxpose.xlu0.b32.end [16/16] 0.0, 128
    %v949 = vpop.trf.xlu0
    %v950 = vpop.trf.xlu0
    %v951 = vpop.trf.xlu0
    %v952 = vpop.trf.xlu0
    %v953 = vpop.trf.xlu0
    %v954 = vpop.trf.xlu0
    %v955 = vpop.trf.xlu0
    %v956 = vpop.trf.xlu0
    %v957 = vpop.trf.xlu0
    %v958 = vpop.trf.xlu0
    %v959 = vpop.trf.xlu0
    %v960 = vpop.trf.xlu0
    %v961 = vpop.trf.xlu0
    %v962 = vpop.trf.xlu0
    %v963 = vpop.trf.xlu0
    %v964 = vpop.trf.xlu0
    %vm965 = vcmask 64512
    %v967 = vsel %vm965, %v949, 0
    %v970 = vsel %vm965, %v950, 0
    %v973 = vsel %vm965, %v951, 0
    %v976 = vsel %vm965, %v952, 0
    %v979 = vsel %vm965, %v953, 0
    %v982 = vsel %vm965, %v954, 0
    %v985 = vsel %vm965, %v955, 0
    %v988 = vsel %vm965, %v956, 0
    %v991 = vsel %vm965, %v957, 0
    %v994 = vsel %vm965, %v958, 0
    %v997 = vsel %vm965, %v959, 0
    %v1000 = vsel %vm965, %v960, 0
    %v1003 = vsel %vm965, %v961, 0
    %v1006 = vsel %vm965, %v962, 0
    %v1009 = vsel %vm965, %v963, 0
    %v1012 = vsel %vm965, %v964, 0
    %1014 = vmatprep.subr.mxu0 0.0
    %1015 = vmatpush1.msra.mxu0 %v754
    %1016 = vmatprep.subr.mxu0 0.0
    %1017 = vmatpush1.msra.mxu0 0.0
    %1018 = vmatprep.subr.mxu0 0.0
    %1019 = vmatpush1.msra.mxu0 0.0
    %1020 = vmatprep.subr.mxu0 0.0
    %1021 = vmatpush1.msra.mxu0 0.0
    %1022 = vmatprep.subr.mxu0 0.0
    %1023 = vmatpush1.msra.mxu0 0.0
    %1024 = vmatprep.subr.mxu0 0.0
    %1025 = vmatpush1.msra.mxu0 0.0
    %1026 = vmatprep.subr.mxu0 0.0
    %1027 = vmatpush1.msra.mxu0 0.0
    %1028 = vmatprep.subr.mxu0 0.0
    %1029 = vmatpush1.msra.mxu0 0.0
    %1030 = vmatprep.subr.mxu0 0.0
    %1031 = vmatpush1.msra.mxu0 0.0
    %1032 = vmatprep.subr.mxu0 0.0
    %1033 = vmatpush1.msra.mxu0 0.0
    %1034 = vmatprep.subr.mxu0 0.0
    %1035 = vmatpush1.msra.mxu0 0.0
    %1036 = vmatprep.subr.mxu0 0.0
    %1037 = vmatpush1.msra.mxu0 0.0
    %1038 = vmatprep.subr.mxu0 0.0
    %1039 = vmatpush1.msra.mxu0 0.0
    %1040 = vmatprep.subr.mxu0 0.0
    %1041 = vmatpush1.msra.mxu0 0.0
    %1042 = vmatprep.subr.mxu0 0.0
    %1043 = vmatpush1.msra.mxu0 0.0
    %1044 = vmatprep.subr.mxu0 0.0
    %1045 = vmatpush1.msra.mxu0 0.0
    %1046 = vmatprep.subr.mxu0 0.0
    %1047 = vmatpush1.msra.mxu0 0.0
    %1048 = vmatprep.subr.mxu0 0.0
    %1049 = vmatpush1.msra.mxu0 0.0
    %1050 = vmatprep.subr.mxu0 0.0
    %1051 = vmatpush1.msra.mxu0 0.0
    %1052 = vmatprep.subr.mxu0 0.0
    %1053 = vmatpush1.msra.mxu0 0.0
    %1054 = vmatprep.subr.mxu0 0.0
    %1055 = vmatpush1.msra.mxu0 0.0
    %1056 = vmatprep.subr.mxu0 0.0
    %1057 = vmatpush1.msra.mxu0 0.0
    %1058 = vmatprep.subr.mxu0 0.0
    %1059 = vmatpush1.msra.mxu0 0.0
    %1060 = vmatprep.subr.mxu0 0.0
    %1061 = vmatpush1.msra.mxu0 0.0
    %1062 = vmatprep.subr.mxu0 0.0
    %1063 = vmatpush1.msra.mxu0 0.0
    %1064 = vmatprep.subr.mxu0 0.0
    %1065 = vmatpush1.msra.mxu0 0.0
    %1066 = vmatprep.subr.mxu0 0.0
    %1067 = vmatpush1.msra.mxu0 0.0
    %1068 = vmatprep.subr.mxu0 0.0
    %1069 = vmatpush1.msra.mxu0 0.0
    %1070 = vmatprep.subr.mxu0 0.0
    %1071 = vmatpush1.msra.mxu0 0.0
    %1072 = vmatprep.subr.mxu0 0.0
    %1073 = vmatpush1.msra.mxu0 0.0
    %1074 = vmatprep.subr.mxu0 0.0
    %1075 = vmatpush1.msra.mxu0 0.0
    %1076 = vmatprep.subr.mxu0 0.0
    %1077 = vmatpush1.msra.mxu0 0.0
    %1078 = vmatprep.mubr.f32.mxu0 0.0
    %1079 = vmatmul.mubr.f32.gmra.mrb[0].mxu0 %v967
    %v1080 = vpop.f32.mrb[0].mxu0
    %v1081 = vadd.f32 0.0, %v1080
    %v1082 = vpop.f32.mrb[0].mxu0
    %1083 = vmatprep.mubr.f32.mxu0 0.0
    %1084 = vmatmul.mubr.f32.gmra.mrb[0].mxu0 %v970
    %v1085 = vpop.f32.mrb[0].mxu0
    %v1086 = vadd.f32 0.0, %v1085
    %v1087 = vpop.f32.mrb[0].mxu0
    %1088 = vmatprep.mubr.f32.mxu0 0.0
    %1089 = vmatmul.mubr.f32.gmra.mrb[0].mxu0 %v973
    %v1090 = vpop.f32.mrb[0].mxu0
    %v1091 = vadd.f32 0.0, %v1090
    %v1092 = vpop.f32.mrb[0].mxu0
    %1093 = vmatprep.mubr.f32.mxu0 0.0
    %1094 = vmatmul.mubr.f32.gmra.mrb[0].mxu0 %v976
    %v1095 = vpop.f32.mrb[0].mxu0
    %v1096 = vadd.f32 0.0, %v1095
    %v1097 = vpop.f32.mrb[0].mxu0
    %1098 = vmatprep.mubr.f32.mxu0 0.0
    %1099 = vmatmul.mubr.f32.gmra.mrb[0].mxu0 %v979
    %v1100 = vpop.f32.mrb[0].mxu0
    %v1101 = vadd.f32 0.0, %v1100
    %v1102 = vpop.f32.mrb[0].mxu0
    %1103 = vmatprep.mubr.f32.mxu0 0.0
    %1104 = vmatmul.mubr.f32.gmra.mrb[0].mxu0 %v982
    %v1105 = vpop.f32.mrb[0].mxu0
    %v1106 = vadd.f32 0.0, %v1105
    %v1107 = vpop.f32.mrb[0].mxu0
    %1108 = vmatprep.mubr.f32.mxu0 0.0
    %1109 = vmatmul.mubr.f32.gmra.mrb[0].mxu0 %v985
    %v1110 = vpop.f32.mrb[0].mxu0
    %v1111 = vadd.f32 0.0, %v1110
    %v1112 = vpop.f32.mrb[0].mxu0
    %1113 = vmatprep.mubr.f32.mxu0 0.0
    %1114 = vmatmul.mubr.f32.gmra.mrb[0].mxu0 %v988
    %v1115 = vpop.f32.mrb[0].mxu0
    %v1116 = vadd.f32 0.0, %v1115
    %v1117 = vpop.f32.mrb[0].mxu0
    %1118 = vmatprep.mubr.f32.mxu0 0.0
    %1119 = vmatmul.mubr.f32.gmra.mrb[0].mxu0 %v991
    %v1120 = vpop.f32.mrb[0].mxu0
    %v1121 = vadd.f32 0.0, %v1120
    %v1122 = vpop.f32.mrb[0].mxu0
    %1123 = vmatprep.mubr.f32.mxu0 0.0
    %1124 = vmatmul.mubr.f32.gmra.mrb[0].mxu0 %v994
    %v1125 = vpop.f32.mrb[0].mxu0
    %v1126 = vadd.f32 0.0, %v1125
    %v1127 = vpop.f32.mrb[0].mxu0
    %1128 = vmatprep.mubr.f32.mxu0 0.0
    %1129 = vmatmul.mubr.f32.gmra.mrb[0].mxu0 %v997
    %v1130 = vpop.f32.mrb[0].mxu0
    %v1131 = vadd.f32 0.0, %v1130
    %v1132 = vpop.f32.mrb[0].mxu0
    %1133 = vmatprep.mubr.f32.mxu0 0.0
    %1134 = vmatmul.mubr.f32.gmra.mrb[0].mxu0 %v1000
    %v1135 = vpop.f32.mrb[0].mxu0
    %v1136 = vadd.f32 0.0, %v1135
    %v1137 = vpop.f32.mrb[0].mxu0
    %1138 = vmatprep.mubr.f32.mxu0 0.0
    %1139 = vmatmul.mubr.f32.gmra.mrb[0].mxu0 %v1003
    %v1140 = vpop.f32.mrb[0].mxu0
    %v1141 = vadd.f32 0.0, %v1140
    %v1142 = vpop.f32.mrb[0].mxu0
    %1143 = vmatprep.mubr.f32.mxu0 0.0
    %1144 = vmatmul.mubr.f32.gmra.mrb[0].mxu0 %v1006
    %v1145 = vpop.f32.mrb[0].mxu0
    %v1146 = vadd.f32 0.0, %v1145
    %v1147 = vpop.f32.mrb[0].mxu0
    %1148 = vmatprep.mubr.f32.mxu0 0.0
    %1149 = vmatmul.mubr.f32.gmra.mrb[0].mxu0 %v1009
    %v1150 = vpop.f32.mrb[0].mxu0
    %v1151 = vadd.f32 0.0, %v1150
    %v1152 = vpop.f32.mrb[0].mxu0
    %1153 = vmatprep.mubr.f32.mxu0 0.0
    %1154 = vmatmul.mubr.f32.gmra.mrb[0].mxu0 %v1012
    %v1155 = vpop.f32.mrb[0].mxu0
    %v1156 = vadd.f32 0.0, %v1155
    %v1157 = vpop.f32.mrb[0].mxu0
    %1158 = vdwg.mxu0
    %v1159 = vmul.f32 %v931, %v931
    %1160 = vadd.xlane.f32.xlu0 %v1159
    %v1161 = vpop.xlane.xlu0 %1160
    %v1162 = vmul.f32 %v1081, %v1081
    %v1163 = vmul.f32 %v1086, %v1086
    %v1164 = vmul.f32 %v1091, %v1091
    %v1165 = vmul.f32 %v1096, %v1096
    %v1166 = vmul.f32 %v1101, %v1101
    %v1167 = vmul.f32 %v1106, %v1106
    %v1168 = vmul.f32 %v1111, %v1111
    %v1169 = vmul.f32 %v1116, %v1116
    %v1170 = vmul.f32 %v1121, %v1121
    %v1171 = vmul.f32 %v1126, %v1126
    %v1172 = vmul.f32 %v1131, %v1131
    %v1173 = vmul.f32 %v1136, %v1136
    %v1174 = vmul.f32 %v1141, %v1141
    %v1175 = vmul.f32 %v1146, %v1146
    %v1176 = vmul.f32 %v1151, %v1151
    %v1177 = vmul.f32 %v1156, %v1156
    %1178 = vadd.xlane.f32.xlu0 %v1162
    %v1179 = vpop.xlane.xlu0 %1178
    %1180 = vadd.xlane.f32.xlu0 %v1163
    %v1181 = vpop.xlane.xlu0 %1180
    %1182 = vadd.xlane.f32.xlu0 %v1164
    %v1183 = vpop.xlane.xlu0 %1182
    %1184 = vadd.xlane.f32.xlu0 %v1165
    %v1185 = vpop.xlane.xlu0 %1184
    %1186 = vadd.xlane.f32.xlu0 %v1166
    %v1187 = vpop.xlane.xlu0 %1186
    %1188 = vadd.xlane.f32.xlu0 %v1167
    %v1189 = vpop.xlane.xlu0 %1188
    %1190 = vadd.xlane.f32.xlu0 %v1168
    %v1191 = vpop.xlane.xlu0 %1190
    %1192 = vadd.xlane.f32.xlu0 %v1169
    %v1193 = vpop.xlane.xlu0 %1192
    %1194 = vadd.xlane.f32.xlu0 %v1170
    %v1195 = vpop.xlane.xlu0 %1194
    %1196 = vadd.xlane.f32.xlu0 %v1171
    %v1197 = vpop.xlane.xlu0 %1196
    %1198 = vadd.xlane.f32.xlu0 %v1172
    %v1199 = vpop.xlane.xlu0 %1198
    %1200 = vadd.xlane.f32.xlu0 %v1173
    %v1201 = vpop.xlane.xlu0 %1200
    %1202 = vadd.xlane.f32.xlu0 %v1174
    %v1203 = vpop.xlane.xlu0 %1202
    %1204 = vadd.xlane.f32.xlu0 %v1175
    %v1205 = vpop.xlane.xlu0 %1204
    %1206 = vadd.xlane.f32.xlu0 %v1176
    %v1207 = vpop.xlane.xlu0 %1206
    %1208 = vadd.xlane.f32.xlu0 %v1177
    %v1209 = vpop.xlane.xlu0 %1208
    %1210 = vmatprep.subr.mxu0 0.0
    %1211 = vmatpush1.xpose.msra.mxu0 %v1081
    %1212 = vmatprep.subr.mxu0 0.0
    %1213 = vmatpush1.xpose.msra.mxu0 %v1086
    %1214 = vmatprep.subr.mxu0 0.0
    %1215 = vmatpush1.xpose.msra.mxu0 %v1091
    %1216 = vmatprep.subr.mxu0 0.0
    %1217 = vmatpush1.xpose.msra.mxu0 %v1096
    %1218 = vmatprep.subr.mxu0 0.0
    %1219 = vmatpush1.xpose.msra.mxu0 %v1101
    %1220 = vmatprep.subr.mxu0 0.0
    %1221 = vmatpush1.xpose.msra.mxu0 %v1106
    %1222 = vmatprep.subr.mxu0 0.0
    %1223 = vmatpush1.xpose.msra.mxu0 %v1111
    %1224 = vmatprep.subr.mxu0 0.0
    %1225 = vmatpush1.xpose.msra.mxu0 %v1116
    %1226 = vmatprep.subr.mxu0 0.0
    %1227 = vmatpush1.xpose.msra.mxu0 %v1121
    %1228 = vmatprep.subr.mxu0 0.0
    %1229 = vmatpush1.xpose.msra.mxu0 %v1126
    %1230 = vmatprep.subr.mxu0 0.0
    %1231 = vmatpush1.xpose.msra.mxu0 %v1131
    %1232 = vmatprep.subr.mxu0 0.0
    %1233 = vmatpush1.xpose.msra.mxu0 %v1136
    %1234 = vmatprep.subr.mxu0 0.0
    %1235 = vmatpush1.xpose.msra.mxu0 %v1141
    %1236 = vmatprep.subr.mxu0 0.0
    %1237 = vmatpush1.xpose.msra.mxu0 %v1146
    %1238 = vmatprep.subr.mxu0 0.0
    %1239 = vmatpush1.xpose.msra.mxu0 %v1151
    %1240 = vmatprep.subr.mxu0 0.0
    %1241 = vmatpush1.xpose.msra.mxu0 %v1156
    %1242 = vmatprep.subr.mxu0 0.0
    %1243 = vmatpush1.xpose.msra.mxu0 0.0
    %1244 = vmatprep.subr.mxu0 0.0
    %1245 = vmatpush1.xpose.msra.mxu0 0.0
    %1246 = vmatprep.subr.mxu0 0.0
    %1247 = vmatpush1.xpose.msra.mxu0 0.0
    %1248 = vmatprep.subr.mxu0 0.0
    %1249 = vmatpush1.xpose.msra.mxu0 0.0
    %1250 = vmatprep.subr.mxu0 0.0
    %1251 = vmatpush1.xpose.msra.mxu0 0.0
    %1252 = vmatprep.subr.mxu0 0.0
    %1253 = vmatpush1.xpose.msra.mxu0 0.0
    %1254 = vmatprep.subr.mxu0 0.0
    %1255 = vmatpush1.xpose.msra.mxu0 0.0
    %1256 = vmatprep.subr.mxu0 0.0
    %1257 = vmatpush1.xpose.msra.mxu0 0.0
    %1258 = vmatprep.subr.mxu0 0.0
    %1259 = vmatpush1.xpose.msra.mxu0 0.0
    %1260 = vmatprep.subr.mxu0 0.0
    %1261 = vmatpush1.xpose.msra.mxu0 0.0
    %1262 = vmatprep.subr.mxu0 0.0
    %1263 = vmatpush1.xpose.msra.mxu0 0.0
    %1264 = vmatprep.subr.mxu0 0.0
    %1265 = vmatpush1.xpose.msra.mxu0 0.0
    %1266 = vmatprep.subr.mxu0 0.0
    %1267 = vmatpush1.xpose.msra.mxu0 0.0
    %1268 = vmatprep.subr.mxu0 0.0
    %1269 = vmatpush1.xpose.msra.mxu0 0.0
    %1270 = vmatprep.subr.mxu0 0.0
    %1271 = vmatpush1.xpose.msra.mxu0 0.0
    %1272 = vmatprep.subr.mxu0 0.0
    %1273 = vmatpush1.xpose.msra.mxu0 0.0
    %1274 = vmatprep.mubr.f32.mxu0 0.0
    %1275 = vmatmul.mubr.f32.gmra.mrb[0].mxu0 %v931
    %v1276 = vpop.f32.mrb[0].mxu0
    %v1277 = vadd.f32 0.0, %v1276
    %v1278 = vpop.f32.mrb[0].mxu0
    %1279 = vdwg.mxu0
    %1280 = vxpose.xlu0.b32.start [1/16] %v1179, 128
    %1281 = vxpose.xlu0.b32.cont [2/16] %v1181, 128
    %1282 = vxpose.xlu0.b32.cont [3/16] %v1183, 128
    %1283 = vxpose.xlu0.b32.cont [4/16] %v1185, 128
    %1284 = vxpose.xlu0.b32.cont [5/16] %v1187, 128
    %1285 = vxpose.xlu0.b32.cont [6/16] %v1189, 128
    %1286 = vxpose.xlu0.b32.cont [7/16] %v1191, 128
    %1287 = vxpose.xlu0.b32.cont [8/16] %v1193, 128
    %1288 = vxpose.xlu0.b32.cont [9/16] %v1195, 128
    %1289 = vxpose.xlu0.b32.cont [10/16] %v1197, 128
    %1290 = vxpose.xlu0.b32.cont [11/16] %v1199, 128
    %1291 = vxpose.xlu0.b32.cont [12/16] %v1201, 128
    %1292 = vxpose.xlu0.b32.cont [13/16] %v1203, 128
    %1293 = vxpose.xlu0.b32.cont [14/16] %v1205, 128
    %1294 = vxpose.xlu0.b32.cont [15/16] %v1207, 128
    %1295 = vxpose.xlu0.b32.end [16/16] %v1209, 128
    %v1296 = vpop.trf.xlu0
    %v1297 = vpop.trf.xlu0
    %v1298 = vpop.trf.xlu0
    %v1299 = vpop.trf.xlu0
    %v1300 = vpop.trf.xlu0
    %v1301 = vpop.trf.xlu0
    %v1302 = vpop.trf.xlu0
    %v1303 = vpop.trf.xlu0
    %v1304 = vpop.trf.xlu0
    %v1305 = vpop.trf.xlu0
    %v1306 = vpop.trf.xlu0
    %v1307 = vpop.trf.xlu0
    %v1308 = vpop.trf.xlu0
    %v1309 = vpop.trf.xlu0
    %v1310 = vpop.trf.xlu0
    %v1311 = vpop.trf.xlu0
    %v1312 = vlaneseq
    %v1313 = vshrl.u32 %v1312, 7
    %v1314 = vsub.s32 0, %v1313
    %v1315 = vrot.slane %v1296, %v1314
    %v1316 = vadd.f32 %v1161, %v1315
    %v1317 = vmul.f32 %v1277, 2.0
    %v1318 = vsub.f32 %v1316, %v1317
    %v1319 = vmax.f32 %v1318, 0.0
    %v1320 = vrsqrt.pop %v1319
    %v1321 = vmul.f32 %v1319, %v1320
    %vm1322 = vcmp.eq.f32.partialorder %v1319, inf
    %v1323 = vsel %vm1322, %v1319, %v1321
    %vm1324 = vcmp.eq.f32.partialorder %v1319, 0.0
    %v1325 = vand.u32 %v1319, 2147483648
    %v1326 = vsel %vm1324, %v1325, %v1323
    %v1327 = vsub.f32 0.0, %v1326
    %1328 = vst [vmem:[#allocation8] sm:$0xff] %v1327
    // Predicated region
    $region34: #{tpu_custom_call.1} parent=1 // pred_check
      _
    $region35: #{tpu_custom_call.1} parent=1 // pred_check_branch
      %1330 = sbr.rel (0) target = $region37
    $region36: #{tpu_custom_call.1} parent=1 // pred_region
      %s1332 = ssub.s32 128, 128
      %1333 = vsyncadd [#allocation4], %s1332
      %s1335 = sshll.u32 [#allocation8], 4
      %s1336 = int_to_ptr.vmem [resolvable:$true] %s1335
      %1338 = dma.vmem_to_hbm [thread:$0]  %s1336, 128, %s5, [#allocation4]
    $region37: #{tpu_custom_call.1} parent=1 // pred_fallthru
      _
    // Predicated region
    $region38: #{tpu_custom_call.1} parent=1 // pred_check
      _
    $region39: #{tpu_custom_call.1} parent=1 // pred_check_branch
      %1340 = sbr.rel (0) target = $region41
    $region40: #{tpu_custom_call.1} parent=1 // pred_region
      %1341 = dma.done [#allocation4], 128
    $region41: #{tpu_custom_call.1} parent=1 // pred_fallthru
      _
    %1342 = vsyncpa [#allocation3], 1
    %1343 = vsyncpa [#allocation6], 1
    %1344 = vsyncpa [#allocation4], 1

</llo_original>
